<compile_context>
chip_gen: v5e
topology: v5e:2x2
jax: 0.10.0
libtpu: 0.0.40
codegen_flags: <defaults>
</compile_context>

<pallas_src>
import functools

import numpy as np
import jax
import jax.numpy as jnp
from jax.experimental import pallas as pl
from jax.experimental.pallas import tpu as pltpu


def zigzag_fused_kernel(x_ref, mask_ref, b2row_ref, wmat_ref, bias_ref, w2_ref,
                        rowbias_ref, colbias_ref, out_ref):
    """Whole batch, horizontal + vertical axis attention, fully fused.

    x_ref:       (BM, H)   flattened inter_matrix, BM = B*k1*k2 (batch folded)
    mask_ref:    (1, BM)   flattened attention_mask (per key)
    b2row_ref:   (1, BM)   obvious_mlp output bias b2, pre-broadcast
    wmat_ref:    (H, 4H)   bf16 packed [wq^T | wk^T | wv^T | w1^T]
    bias_ref:    (1, 4H)   f32  packed [bq | bk | bv | b1]
    w2_ref:      (1, H)    bf16 obvious_mlp second-layer weight
    rowbias_ref: (BM, BM)  f32 additive bias: 0 if same batch & same k1-row else -1e30
    colbias_ref: (BM, BM)  f32 additive bias: 0 if same batch & same k2-col else -1e30
    out_ref:     (BM, H)   hor + ver attention output
    """
    H = wmat_ref.shape[0]

    xf = x_ref[...]                                   # (BM, H) f32

    # --- fused q/k/v/MLP-hidden projection: one lane-dense MXU matmul -------
    proj = jnp.dot(xf.astype(jnp.bfloat16), wmat_ref[...],
                   preferred_element_type=jnp.float32) + bias_ref[...]   # (BM, 4H)
    q = proj[:, 0 * H:1 * H]
    k = proj[:, 1 * H:2 * H]
    v = proj[:, 2 * H:3 * H]
    h1 = jnp.maximum(proj[:, 3 * H:4 * H], 0.0)
    # TODO(synk): Dropout(0.2) in obvious_mlp is eval-mode identity (no PRNG masking).

    # obviousness row (1, BM): sigmoid(h1 @ w2^T + b2), contracted on the MXU
    # so it stays lane-oriented (no sublane->lane transpose).
    obv_logit = jax.lax.dot_general(
        w2_ref[...], h1.astype(jnp.bfloat16),
        (((1,), (1,)), ((), ())), preferred_element_type=jnp.float32) + b2row_ref[...]
    obv_row = jax.nn.sigmoid(obv_logit)               # (1, BM) f32

    # --- shared flat score matrix (used by both axis passes) ----------------
    scale = 1.0 / (H ** 0.5)
    s = jax.lax.dot_general(
        q.astype(jnp.bfloat16), k.astype(jnp.bfloat16),
        (((1,), (1,)), ((), ())), preferred_element_type=jnp.float32)    # (BM, BM)
    base = s * (scale * obv_row)                      # obv of key n scales column n
    base = jnp.where(mask_ref[...] < 0.5, -1e9, base)  # attention mask, per key

    def softmax_rows(logits):
        m = jnp.max(logits, axis=-1, keepdims=True)
        e = jnp.exp(logits - m)
        return e * pl.reciprocal(jnp.sum(e, axis=-1, keepdims=True), approx=True)

    # Constant additive structural biases replace iota/compare/select masks.
    # Off-axis / off-batch entries sit at -1e30 (<< -1e9), so each 128-wide
    # softmax reproduces the reference's 8-wide softmax exactly, including
    # uniform output on fully attention-masked rows.
    p = (softmax_rows(base + rowbias_ref[...]) +
         softmax_rows(base + colbias_ref[...]))                           # (BM, BM)

    # hor + ver = (P_h + P_v) @ v -> one output matmul, kept in f32.
    out_ref[...] = jnp.dot(p, v, preferred_element_type=jnp.float32).astype(out_ref.dtype)


def pack_zigzag_params(wq, bq, wk, bk, wv, bv, w1, b1, w2, b2):
    """Pack Linear params (PyTorch [out,in] layout) into kernel-ready operands."""
    wmat = jnp.concatenate([wq.T, wk.T, wv.T, w1.T], axis=1).astype(jnp.bfloat16)  # (H, 4H)
    bias = jnp.concatenate([bq, bk, bv, b1])[None, :].astype(jnp.float32)          # (1, 4H)
    w2p = w2.astype(jnp.bfloat16)                                                  # (1, H)
    b2p = b2.astype(jnp.float32)                                                   # (1,)
    return wmat, bias, w2p, b2p


@functools.lru_cache(maxsize=None)
def _structural_biases(B, k1, k2):
    """Numpy-baked (BM, BM) additive biases: 0 on same batch & same row/col, else -1e30."""
    M = k1 * k2
    BM = B * M
    idx = np.arange(BM)
    bb = idx // M
    rr = (idx % M) // k2
    cc = idx % k2
    same_b = bb[:, None] == bb[None, :]
    row_bias = np.where(same_b & (rr[:, None] == rr[None, :]), 0.0, -1e30).astype(np.float32)
    col_bias = np.where(same_b & (cc[:, None] == cc[None, :]), 0.0, -1e30).astype(np.float32)
    return jnp.asarray(row_bias), jnp.asarray(col_bias)


def zigzag_updating(inter_matrix, attention_mask, packed_params):
    """Fused horizontal+vertical Zigzag_updating forward (PyTorch eval semantics)."""
    wmat, bias, w2p, b2p = packed_params
    B, k1, k2, H = inter_matrix.shape
    M = k1 * k2
    BM = B * M

    xf = inter_matrix.reshape(BM, H)              # free wrapper-side reshapes
    maskf = attention_mask.reshape(1, BM)
    b2row = jnp.broadcast_to(b2p.reshape(1, 1), (1, BM)).astype(jnp.float32)
    row_bias, col_bias = _structural_biases(B, k1, k2)

    full = lambda i: (0, 0)
    out = pl.pallas_call(
        zigzag_fused_kernel,
        out_shape=jax.ShapeDtypeStruct((BM, H), jnp.float32),
        grid_spec=pltpu.PrefetchScalarGridSpec(
            num_scalar_prefetch=0,
            grid=(1,),                            # batch folded -> single grid step
            in_specs=[
                pl.BlockSpec((BM, H), full),
                pl.BlockSpec((1, BM), full),
                pl.BlockSpec((1, BM), full),
                pl.BlockSpec((H, 4 * H), full),
                pl.BlockSpec((1, 4 * H), full),
                pl.BlockSpec((1, H), full),
                pl.BlockSpec((BM, BM), full),
                pl.BlockSpec((BM, BM), full),
            ],
            out_specs=pl.BlockSpec((BM, H), full),
        ),
        compiler_params=pltpu.CompilerParams(dimension_semantics=("arbitrary",)),
    )(xf, maskf, b2row, wmat, bias, w2p, row_bias, col_bias)
    # Output last dim stays H=32 (<128 lanes): masked stores cost less than an
    # in-kernel sublane->lane relayout would (per perf review).
    return out.reshape(B, k1, k2, H)


def reference(x, mask, weights):
    """Pure-JAX f32 reference matching the PyTorch Zigzag_updating (eval mode)."""
    wq, bq, wk, bk, wv, bv, w1, b1, w2, b2 = weights
    lin = lambda a, w, b: a @ w.T + b
    q, k_, v = lin(x, wq, bq), lin(x, wk, bk), lin(x, wv, bv)
    h1 = jnp.maximum(lin(x, w1, b1), 0.0)
    obv = jax.nn.sigmoid(h1 @ w2[0] + b2[0])          # (B, k1, k2)

    def axis(q, k_, v, obv, mask):
        H = q.shape[-1]
        logits = jnp.einsum('bijh,bilh->bijl', q, k_) / H ** 0.5
        logits = logits * obv[:, :, None, :]
        logits = jnp.where(mask[:, :, None, :] < 0.5, -1e9, logits)
        p = jax.nn.softmax(logits, axis=-1)
        return jnp.einsum('bijl,bilh->bijh', p, v)

    t = lambda a: a.swapaxes(1, 2)
    return axis(q, k_, v, obv, mask) + t(axis(t(q), t(k_), t(v), t(obv), t(mask)))


if __name__ == "__main__":
    B, K, H = 2, 8, 32
    key = jax.random.PRNGKey(0)
    keys = jax.random.split(key, 12)

    x = jax.random.normal(keys[0], (B, K, K, H), dtype=jnp.float32)
    mask = (jax.random.uniform(keys[1], (B, K, K)) > 0.2).astype(jnp.float32)

    s = 1.0 / np.sqrt(H)
    u = lambda kk, shape: jax.random.uniform(kk, shape, jnp.float32, -s, s)
    wq, bq = u(keys[2], (H, H)), u(keys[3], (H,))
    wk, bk = u(keys[4], (H, H)), u(keys[5], (H,))
    wv, bv = u(keys[6], (H, H)), u(keys[7], (H,))
    w1, b1 = u(keys[8], (H, H)), u(keys[9], (H,))
    w2, b2 = u(keys[10], (1, H)), u(keys[11], (1,))

    packed = pack_zigzag_params(wq, bq, wk, bk, wv, bv, w1, b1, w2, b2)

    out = zigzag_updating(x, mask, packed)
    out = jax.block_until_ready(out)

    ref = reference(x, mask, (wq, bq, wk, bk, wv, bv, w1, b1, w2, b2))
    assert out.shape == (B, K, K, H)
    # bf16 projection / score operands inside the kernel -> slightly looser
    # tolerance vs the f32 reference.
    assert np.allclose(np.asarray(out), np.asarray(ref), rtol=3e-2, atol=3e-2), \
        "Pallas kernel output does not match reference"
    print("KERNEL_OK")
</pallas_src>

<mosaic_0001>
module attributes {stable_mosaic.version = 11 : i64} {
  func.func @zigzag_fused_kernel(%arg0: i32, %arg1: memref<128x32xf32, #tpu.memory_space<vmem>>, %arg2: memref<1x128xf32, #tpu.memory_space<vmem>>, %arg3: memref<1x128xf32, #tpu.memory_space<vmem>>, %arg4: memref<32x128xbf16, #tpu.memory_space<vmem>>, %arg5: memref<1x128xf32, #tpu.memory_space<vmem>>, %arg6: memref<1x32xbf16, #tpu.memory_space<vmem>>, %arg7: memref<128x128xf32, #tpu.memory_space<vmem>>, %arg8: memref<128x128xf32, #tpu.memory_space<vmem>>, %arg9: memref<128x32xf32, #tpu.memory_space<vmem>>) attributes {dimension_semantics = [#tpu.dimension_semantics<arbitrary>], iteration_bounds = array<i64: 1>, scalar_prefetch = 0 : i64, scratch_operands = 0 : i64, tpu.core_type = #tpu.core_type<tc>, window_params = [{pipeline_mode = #tpu.pipeline_mode<synchronous>, transform_indices = @transform_0, window_bounds = array<i64: 128, 32>}, {pipeline_mode = #tpu.pipeline_mode<synchronous>, transform_indices = @transform_1, window_bounds = array<i64: 1, 128>}, {pipeline_mode = #tpu.pipeline_mode<synchronous>, transform_indices = @transform_2, window_bounds = array<i64: 1, 128>}, {pipeline_mode = #tpu.pipeline_mode<synchronous>, transform_indices = @transform_3, window_bounds = array<i64: 32, 128>}, {pipeline_mode = #tpu.pipeline_mode<synchronous>, transform_indices = @transform_4, window_bounds = array<i64: 1, 128>}, {pipeline_mode = #tpu.pipeline_mode<synchronous>, transform_indices = @transform_5, window_bounds = array<i64: 1, 32>}, {pipeline_mode = #tpu.pipeline_mode<synchronous>, transform_indices = @transform_6, window_bounds = array<i64: 128, 128>}, {pipeline_mode = #tpu.pipeline_mode<synchronous>, transform_indices = @transform_7, window_bounds = array<i64: 128, 128>}, {pipeline_mode = #tpu.pipeline_mode<synchronous>, transform_indices = @transform_8, window_bounds = array<i64: 128, 32>}]} {
    %c0 = arith.constant 0 : index
    %c0_0 = arith.constant 0 : index
    %0 = vector.load %arg1[%c0, %c0_0] : memref<128x32xf32, #tpu.memory_space<vmem>>, vector<128x32xf32>
    %1 = arith.truncf %0 : vector<128x32xf32> to vector<128x32xbf16>
    %c0_1 = arith.constant 0 : index
    %c0_2 = arith.constant 0 : index
    %2 = vector.load %arg4[%c0_1, %c0_2] : memref<32x128xbf16, #tpu.memory_space<vmem>>, vector<32x128xbf16>
    %cst = arith.constant dense<0.000000e+00> : vector<128x128xf32>
    %3 = tpu.matmul %1, %2, %cst {dimension_numbers = #tpu.dot_dimension_numbers<[1], [0], [0], [1], [0, 0, 1, 1], [], []>} : vector<128x32xbf16>, vector<32x128xbf16>, vector<128x128xf32> -> vector<128x128xf32>
    %c0_3 = arith.constant 0 : index
    %c0_4 = arith.constant 0 : index
    %4 = vector.load %arg5[%c0_3, %c0_4] : memref<1x128xf32, #tpu.memory_space<vmem>>, vector<1x128xf32>
    %5 = vector.broadcast %4 : vector<1x128xf32> to vector<128x128xf32>
    %6 = arith.addf %3, %5 : vector<128x128xf32>
    %7 = vector.extract_strided_slice %6 {offsets = [0, 0], sizes = [128, 32], strides = [1, 1]} : vector<128x128xf32> to vector<128x32xf32>
    %8 = vector.extract_strided_slice %6 {offsets = [0, 32], sizes = [128, 32], strides = [1, 1]} : vector<128x128xf32> to vector<128x32xf32>
    %9 = vector.extract_strided_slice %6 {offsets = [0, 64], sizes = [128, 32], strides = [1, 1]} : vector<128x128xf32> to vector<128x32xf32>
    %10 = vector.extract_strided_slice %6 {offsets = [0, 96], sizes = [128, 32], strides = [1, 1]} : vector<128x128xf32> to vector<128x32xf32>
    %cst_5 = arith.constant 0.000000e+00 : f32
    %11 = vector.broadcast %cst_5 : f32 to vector<128x32xf32>
    %12 = arith.maximumf %10, %11 : vector<128x32xf32>
    %c0_6 = arith.constant 0 : index
    %c0_7 = arith.constant 0 : index
    %13 = vector.load %arg6[%c0_6, %c0_7] : memref<1x32xbf16, #tpu.memory_space<vmem>>, vector<1x32xbf16>
    %14 = arith.truncf %12 : vector<128x32xf32> to vector<128x32xbf16>
    %cst_8 = arith.constant dense<0.000000e+00> : vector<1x128xf32>
    %15 = tpu.matmul %13, %14, %cst_8 {dimension_numbers = #tpu.dot_dimension_numbers<[1], [1], [0], [0], [0, 0, 1, 0], [], []>} : vector<1x32xbf16>, vector<128x32xbf16>, vector<1x128xf32> -> vector<1x128xf32>
    %c0_9 = arith.constant 0 : index
    %c0_10 = arith.constant 0 : index
    %16 = vector.load %arg3[%c0_9, %c0_10] : memref<1x128xf32, #tpu.memory_space<vmem>>, vector<1x128xf32>
    %17 = arith.addf %15, %16 : vector<1x128xf32>
    %18 = arith.negf %17 : vector<1x128xf32>
    %19 = math.exp %18 : vector<1x128xf32>
    %cst_11 = arith.constant 1.000000e+00 : f32
    %20 = vector.broadcast %cst_11 : f32 to vector<1x128xf32>
    %21 = arith.addf %20, %19 : vector<1x128xf32>
    %22 = arith.divf %20, %21 : vector<1x128xf32>
    %23 = arith.truncf %7 : vector<128x32xf32> to vector<128x32xbf16>
    %24 = arith.truncf %8 : vector<128x32xf32> to vector<128x32xbf16>
    %cst_12 = arith.constant dense<0.000000e+00> : vector<128x128xf32>
    %25 = tpu.matmul %23, %24, %cst_12 {dimension_numbers = #tpu.dot_dimension_numbers<[1], [1], [0], [0], [0, 0, 1, 0], [], []>} : vector<128x32xbf16>, vector<128x32xbf16>, vector<128x128xf32> -> vector<128x128xf32>
    %cst_13 = arith.constant 0.176776692 : f32
    %26 = vector.broadcast %cst_13 : f32 to vector<1x128xf32>
    %27 = arith.mulf %26, %22 : vector<1x128xf32>
    %28 = vector.broadcast %27 : vector<1x128xf32> to vector<128x128xf32>
    %29 = arith.mulf %25, %28 : vector<128x128xf32>
    %c0_14 = arith.constant 0 : index
    %c0_15 = arith.constant 0 : index
    %30 = vector.load %arg2[%c0_14, %c0_15] : memref<1x128xf32, #tpu.memory_space<vmem>>, vector<1x128xf32>
    %cst_16 = arith.constant 5.000000e-01 : f32
    %31 = vector.broadcast %cst_16 : f32 to vector<1x128xf32>
    %32 = arith.cmpf olt, %30, %31 : vector<1x128xf32>
    %cst_17 = arith.constant -1.000000e+09 : f32
    %33 = vector.shape_cast %32 : vector<1x128xi1> to vector<1x128xi1>
    %34 = vector.broadcast %33 : vector<1x128xi1> to vector<128x128xi1>
    %35 = vector.broadcast %cst_17 : f32 to vector<128x128xf32>
    %36 = arith.select %34, %35, %29 : vector<128x128xi1>, vector<128x128xf32>
    %c0_18 = arith.constant 0 : index
    %c0_19 = arith.constant 0 : index
    %37 = vector.load %arg7[%c0_18, %c0_19] : memref<128x128xf32, #tpu.memory_space<vmem>>, vector<128x128xf32>
    %38 = arith.addf %36, %37 : vector<128x128xf32>
    %cst_20 = arith.constant dense<0xFF800000> : vector<128xf32>
    %39 = vector.multi_reduction <maximumf>, %38, %cst_20 [1] : vector<128x128xf32> to vector<128xf32>
    %40 = vector.shape_cast %39 : vector<128xf32> to vector<128x1xf32>
    %41 = vector.broadcast %40 : vector<128x1xf32> to vector<128x128xf32>
    %42 = arith.subf %38, %41 : vector<128x128xf32>
    %43 = math.exp %42 : vector<128x128xf32>
    %cst_21 = arith.constant dense<0.000000e+00> : vector<128xf32>
    %44 = vector.multi_reduction <add>, %43, %cst_21 [1] : vector<128x128xf32> to vector<128xf32>
    %45 = vector.shape_cast %44 : vector<128xf32> to vector<128x1xf32>
    %46 = tpu.reciprocal %45 {approx = true} : vector<128x1xf32> -> vector<128x1xf32>
    %47 = vector.broadcast %46 : vector<128x1xf32> to vector<128x128xf32>
    %48 = arith.mulf %43, %47 : vector<128x128xf32>
    %c0_22 = arith.constant 0 : index
    %c0_23 = arith.constant 0 : index
    %49 = vector.load %arg8[%c0_22, %c0_23] : memref<128x128xf32, #tpu.memory_space<vmem>>, vector<128x128xf32>
    %50 = arith.addf %36, %49 : vector<128x128xf32>
    %cst_24 = arith.constant dense<0xFF800000> : vector<128xf32>
    %51 = vector.multi_reduction <maximumf>, %50, %cst_24 [1] : vector<128x128xf32> to vector<128xf32>
    %52 = vector.shape_cast %51 : vector<128xf32> to vector<128x1xf32>
    %53 = vector.broadcast %52 : vector<128x1xf32> to vector<128x128xf32>
    %54 = arith.subf %50, %53 : vector<128x128xf32>
    %55 = math.exp %54 : vector<128x128xf32>
    %cst_25 = arith.constant dense<0.000000e+00> : vector<128xf32>
    %56 = vector.multi_reduction <add>, %55, %cst_25 [1] : vector<128x128xf32> to vector<128xf32>
    %57 = vector.shape_cast %56 : vector<128xf32> to vector<128x1xf32>
    %58 = tpu.reciprocal %57 {approx = true} : vector<128x1xf32> -> vector<128x1xf32>
    %59 = vector.broadcast %58 : vector<128x1xf32> to vector<128x128xf32>
    %60 = arith.mulf %55, %59 : vector<128x128xf32>
    %61 = arith.addf %48, %60 : vector<128x128xf32>
    %cst_26 = arith.constant dense<0.000000e+00> : vector<128x32xf32>
    %62 = tpu.matmul %61, %9, %cst_26 {dimension_numbers = #tpu.dot_dimension_numbers<[1], [0], [0], [1], [0, 0, 1, 1], [], []>} : vector<128x128xf32>, vector<128x32xf32>, vector<128x32xf32> -> vector<128x32xf32>
    %c0_27 = arith.constant 0 : index
    %c0_28 = arith.constant 0 : index
    %63 = vector.load %arg9[%c0_27, %c0_28] : memref<128x32xf32, #tpu.memory_space<vmem>>, vector<128x32xf32>
    tpu.vector_store %arg9[%c0_27, %c0_28], %62 {strides = array<i32>} : memref<128x32xf32, #tpu.memory_space<vmem>>, vector<128x32xf32>,
    return
  }
  func.func @transform_0(%arg0: i32) -> (i32, i32) {
    %c0_i32 = arith.constant 0 : i32
    %c0_i32_0 = arith.constant 0 : i32
    %c0_i32_1 = arith.constant 0 : i32
    return %c0_i32, %c0_i32_0 : i32, i32
  }
  func.func @transform_1(%arg0: i32) -> (i32, i32) {
    %c0_i32 = arith.constant 0 : i32
    %c0_i32_0 = arith.constant 0 : i32
    %c0_i32_1 = arith.constant 0 : i32
    return %c0_i32, %c0_i32_0 : i32, i32
  }
  func.func @transform_2(%arg0: i32) -> (i32, i32) {
    %c0_i32 = arith.constant 0 : i32
    %c0_i32_0 = arith.constant 0 : i32
    %c0_i32_1 = arith.constant 0 : i32
    return %c0_i32, %c0_i32_0 : i32, i32
  }
  func.func @transform_3(%arg0: i32) -> (i32, i32) {
    %c0_i32 = arith.constant 0 : i32
    %c0_i32_0 = arith.constant 0 : i32
    %c0_i32_1 = arith.constant 0 : i32
    return %c0_i32, %c0_i32_0 : i32, i32
  }
  func.func @transform_4(%arg0: i32) -> (i32, i32) {
    %c0_i32 = arith.constant 0 : i32
    %c0_i32_0 = arith.constant 0 : i32
    %c0_i32_1 = arith.constant 0 : i32
    return %c0_i32, %c0_i32_0 : i32, i32
  }
  func.func @transform_5(%arg0: i32) -> (i32, i32) {
    %c0_i32 = arith.constant 0 : i32
    %c0_i32_0 = arith.constant 0 : i32
    %c0_i32_1 = arith.constant 0 : i32
    return %c0_i32, %c0_i32_0 : i32, i32
  }
  func.func @transform_6(%arg0: i32) -> (i32, i32) {
    %c0_i32 = arith.constant 0 : i32
    %c0_i32_0 = arith.constant 0 : i32
    %c0_i32_1 = arith.constant 0 : i32
    return %c0_i32, %c0_i32_0 : i32, i32
  }
  func.func @transform_7(%arg0: i32) -> (i32, i32) {
    %c0_i32 = arith.constant 0 : i32
    %c0_i32_0 = arith.constant 0 : i32
    %c0_i32_1 = arith.constant 0 : i32
    return %c0_i32, %c0_i32_0 : i32, i32
  }
  func.func @transform_8(%arg0: i32) -> (i32, i32) {
    %c0_i32 = arith.constant 0 : i32
    %c0_i32_0 = arith.constant 0 : i32
    %c0_i32_1 = arith.constant 0 : i32
    return %c0_i32, %c0_i32_0 : i32, i32
  }
}

</mosaic_0001>

<llo_original>
// kernel: tpu_custom_call.1
$region0: #{tpu_custom_call.1}
  #allocation0 [shape = 'u32[]', space=smem, size = 0x4, offset = 0x4, fixed_abs, tag = 'smem constant byte address 0x4 - core index']
  #allocation1 [shape = 'u32[72,128]{1,0:T(1,128)}', space=vmem, size = 0x9000, scoped, tag = 'internal scratch']
  %s0 = inlined_call_operand.vmem [shape: f32[128,32], index: 0, kind: input, shape index: {}]
  %s1 = inlined_call_operand.vmem [shape: f32[1,128], index: 1, kind: input, shape index: {}]
  %s2 = inlined_call_operand.vmem [shape: f32[1,128], index: 2, kind: input, shape index: {}]
  %s3 = inlined_call_operand.vmem [shape: bf16[32,128], index: 3, kind: input, shape index: {}]
  %s4 = inlined_call_operand.vmem [shape: f32[1,128], index: 4, kind: input, shape index: {}]
  %s5 = inlined_call_operand.vmem [shape: bf16[1,32], index: 5, kind: input, shape index: {}]
  %s6 = inlined_call_operand.vmem [shape: f32[128,128], index: 6, kind: input, shape index: {}]
  %s7 = inlined_call_operand.hbm [shape: f32[128,128], index: 7, kind: input, shape index: {}]
  %s8 = inlined_call_operand.vmem [shape: f32[128,32], index: 8, kind: output, shape index: {}]
  %s9 = sld [smem:[#allocation0]]
  $region46: #{tpu_custom_call.1} parent=0
    _
  %s11 = ssub.s32 1, %s9
  %s12 = scalar_select 0, %s11, %s9
  $region1: #{tpu_custom_call.1} parent=0
    #allocation2 [shape = 'u8[65536]{0}', space=vmem, size = 0x10000, scoped, tag = 'input window, operand 7, single buffered']
    #allocation3 [shape = 's32[1]{0}', space=sflag, size = 0x4, scoped, tag = 'scoped memory for tpu_custom_call.1']
    %13 = vsyncpa [#allocation3], 0
    // Predicated region
    $region2: #{tpu_custom_call.1} parent=1 // pred_check
      _
    $region3: #{tpu_custom_call.1} parent=1 // pred_check_branch
      %15 = sbr.rel (0) target = $region5
    $region4: #{tpu_custom_call.1} parent=1 // pred_region
      _
    $region5: #{tpu_custom_call.1} parent=1 // pred_fallthru
      _
    // Predicated region
    $region6: #{tpu_custom_call.1} parent=1 // pred_check
      _
    $region7: #{tpu_custom_call.1} parent=1 // pred_check_branch
      %17 = sbr.rel (0) target = $region9
    $region8: #{tpu_custom_call.1} parent=1 // pred_region
      _
    $region9: #{tpu_custom_call.1} parent=1 // pred_fallthru
      _
    // Predicated region
    $region10: #{tpu_custom_call.1} parent=1 // pred_check
      _
    $region11: #{tpu_custom_call.1} parent=1 // pred_check_branch
      %19 = sbr.rel (0) target = $region13
    $region12: #{tpu_custom_call.1} parent=1 // pred_region
      _
    $region13: #{tpu_custom_call.1} parent=1 // pred_fallthru
      _
    // Predicated region
    $region14: #{tpu_custom_call.1} parent=1 // pred_check
      _
    $region15: #{tpu_custom_call.1} parent=1 // pred_check_branch
      %21 = sbr.rel (0) target = $region17
    $region16: #{tpu_custom_call.1} parent=1 // pred_region
      _
    $region17: #{tpu_custom_call.1} parent=1 // pred_fallthru
      _
    // Predicated region
    $region18: #{tpu_custom_call.1} parent=1 // pred_check
      _
    $region19: #{tpu_custom_call.1} parent=1 // pred_check_branch
      %23 = sbr.rel (0) target = $region21
    $region20: #{tpu_custom_call.1} parent=1 // pred_region
      _
    $region21: #{tpu_custom_call.1} parent=1 // pred_fallthru
      _
    // Predicated region
    $region22: #{tpu_custom_call.1} parent=1 // pred_check
      _
    $region23: #{tpu_custom_call.1} parent=1 // pred_check_branch
      %25 = sbr.rel (0) target = $region25
    $region24: #{tpu_custom_call.1} parent=1 // pred_region
      _
    $region25: #{tpu_custom_call.1} parent=1 // pred_fallthru
      _
    // Predicated region
    $region26: #{tpu_custom_call.1} parent=1 // pred_check
      _
    $region27: #{tpu_custom_call.1} parent=1 // pred_check_branch
      %27 = sbr.rel (0) target = $region29
    $region28: #{tpu_custom_call.1} parent=1 // pred_region
      _
    $region29: #{tpu_custom_call.1} parent=1 // pred_fallthru
      _
    // Predicated region
    $region30: #{tpu_custom_call.1} parent=1 // pred_check
      _
    $region31: #{tpu_custom_call.1} parent=1 // pred_check_branch
      %29 = sbr.rel (0) target = $region33
    $region32: #{tpu_custom_call.1} parent=1 // pred_region
      %31 = vsyncadd [#allocation3], 0
      %s32 = sshll.u32 %s7, 4
      %s33 = int_to_ptr.hbm [resolvable:$true] %s32
      %s34 = sshll.u32 [#allocation2], 4
      %s35 = int_to_ptr.vmem [resolvable:$true] %s34
      %40 = dma.hbm_to_vmem [thread:$0]  %s33, 2048, %s35, [#allocation3], 128, 128, 8
    $region33: #{tpu_custom_call.1} parent=1 // pred_fallthru
      _
    // Predicated region
    $region34: #{tpu_custom_call.1} parent=1 // pred_check
      _
    $region35: #{tpu_custom_call.1} parent=1 // pred_check_branch
      %42 = sbr.rel (0) target = $region37
    $region36: #{tpu_custom_call.1} parent=1 // pred_region
      %44 = dma.done [#allocation3], 2048
    $region37: #{tpu_custom_call.1} parent=1 // pred_fallthru
      _
    %v46 = vld [vmem:[%s0] sm:$0xff]
    %v47 = vld [vmem:[%s0 + $0x8] sm:$0xff]
    %v48 = vld [vmem:[%s0 + $0x10] sm:$0xff]
    %v49 = vld [vmem:[%s0 + $0x18] sm:$0xff]
    %v50 = vld [vmem:[%s0 + $0x20] sm:$0xff]
    %v51 = vld [vmem:[%s0 + $0x28] sm:$0xff]
    %v52 = vld [vmem:[%s0 + $0x30] sm:$0xff]
    %v53 = vld [vmem:[%s0 + $0x38] sm:$0xff]
    %v54 = vld [vmem:[%s0 + $0x40] sm:$0xff]
    %v55 = vld [vmem:[%s0 + $0x48] sm:$0xff]
    %v56 = vld [vmem:[%s0 + $0x50] sm:$0xff]
    %v57 = vld [vmem:[%s0 + $0x58] sm:$0xff]
    %v58 = vld [vmem:[%s0 + $0x60] sm:$0xff]
    %v59 = vld [vmem:[%s0 + $0x68] sm:$0xff]
    %v60 = vld [vmem:[%s0 + $0x70] sm:$0xff]
    %v61 = vld [vmem:[%s0 + $0x78] sm:$0xff]
    %v62 = vpack.c.bf16 %v47, %v46
    %v63 = vpack.c.bf16 %v49, %v48
    %v64 = vpack.c.bf16 %v51, %v50
    %v65 = vpack.c.bf16 %v53, %v52
    %v66 = vpack.c.bf16 %v55, %v54
    %v67 = vpack.c.bf16 %v57, %v56
    %v68 = vpack.c.bf16 %v59, %v58
    %v69 = vpack.c.bf16 %v61, %v60
    %v70 = vld [vmem:[%s3] sm:$0xf]
    %v71 = vld [vmem:[%s3 + $0x4] sm:$0xf]
    %v72 = vld [vmem:[%s3 + $0x8] sm:$0xf]
    %v73 = vld [vmem:[%s3 + $0xc] sm:$0xf]
    %v74 = vld [vmem:[%s4] sm:$0x1]
    %v76 = vperm.slane %v74, 0
    %v82 = vunpack.c.l.b16 %v70
    %v83 = vunpack.c.l.b16 %v71
    %v84 = vunpack.c.l.b16 %v72
    %v85 = vunpack.c.l.b16 %v73
    %v86 = vpack.c.b16 %v83, %v82
    %v87 = vpack.c.b16 %v85, %v84
    %vm90 = vcmask 261120
    %v92 = vsel %vm90, %v62, 0
    %v95 = vsel %vm90, %v63, 0
    %v98 = vsel %vm90, %v64, 0
    %v101 = vsel %vm90, %v65, 0
    %v104 = vsel %vm90, %v66, 0
    %v107 = vsel %vm90, %v67, 0
    %v110 = vsel %vm90, %v68, 0
    %v113 = vsel %vm90, %v69, 0
    %115 = vmatpush.bf16.msra.mxu0 0
    %116 = vmatpush.bf16.msra.mxu0 0
    %117 = vmatpush.bf16.msra.mxu0 0
    %118 = vmatpush.bf16.msra.mxu0 0
    %119 = vmatpush.bf16.msra.mxu0 0
    %120 = vmatpush.bf16.msra.mxu0 0
    %121 = vmatpush.bf16.msra.mxu0 %v87
    %122 = vmatpush.bf16.msra.mxu0 %v86
    %123 = vmatmul.bf16.gmra.mxu0 %v92
    %v124 = vpop.f32.mrf.mxu0
    %v125 = vadd.f32 %v76, %v124
    %v126 = vpop.f32.mrf.mxu0
    %v127 = vadd.f32 %v76, %v126
    %128 = vmatmul.bf16.gmra.mxu0 %v95
    %v129 = vpop.f32.mrf.mxu0
    %v130 = vadd.f32 %v76, %v129
    %v131 = vpop.f32.mrf.mxu0
    %v132 = vadd.f32 %v76, %v131
    %133 = vmatmul.bf16.gmra.mxu0 %v98
    %v134 = vpop.f32.mrf.mxu0
    %v135 = vadd.f32 %v76, %v134
    %v136 = vpop.f32.mrf.mxu0
    %v137 = vadd.f32 %v76, %v136
    %138 = vmatmul.bf16.gmra.mxu0 %v101
    %v139 = vpop.f32.mrf.mxu0
    %v140 = vadd.f32 %v76, %v139
    %v141 = vpop.f32.mrf.mxu0
    %v142 = vadd.f32 %v76, %v141
    %143 = vmatmul.bf16.gmra.mxu0 %v104
    %v144 = vpop.f32.mrf.mxu0
    %v145 = vadd.f32 %v76, %v144
    %v146 = vpop.f32.mrf.mxu0
    %v147 = vadd.f32 %v76, %v146
    %148 = vmatmul.bf16.gmra.mxu0 %v107
    %v149 = vpop.f32.mrf.mxu0
    %v150 = vadd.f32 %v76, %v149
    %v151 = vpop.f32.mrf.mxu0
    %v152 = vadd.f32 %v76, %v151
    %153 = vmatmul.bf16.gmra.mxu0 %v110
    %v154 = vpop.f32.mrf.mxu0
    %v155 = vadd.f32 %v76, %v154
    %v156 = vpop.f32.mrf.mxu0
    %v157 = vadd.f32 %v76, %v156
    %158 = vmatmul.bf16.gmra.mxu0 %v113
    %v159 = vpop.f32.mrf.mxu0
    %v160 = vadd.f32 %v76, %v159
    %v161 = vpop.f32.mrf.mxu0
    %v162 = vadd.f32 %v76, %v161
    %163 = vdwg.mxu0
    %v164 = vmax.f32 %v125, 0.0
    %v165 = vmax.f32 %v127, 0.0
    %v166 = vmax.f32 %v130, 0.0
    %v167 = vmax.f32 %v132, 0.0
    %v168 = vmax.f32 %v135, 0.0
    %v169 = vmax.f32 %v137, 0.0
    %v170 = vmax.f32 %v140, 0.0
    %v171 = vmax.f32 %v142, 0.0
    %v172 = vmax.f32 %v145, 0.0
    %v173 = vmax.f32 %v147, 0.0
    %v174 = vmax.f32 %v150, 0.0
    %v175 = vmax.f32 %v152, 0.0
    %v176 = vmax.f32 %v155, 0.0
    %v177 = vmax.f32 %v157, 0.0
    %v178 = vmax.f32 %v160, 0.0
    %v179 = vmax.f32 %v162, 0.0
    %v180 = vld [vmem:[%s5] sm:$0x1]
    %v181 = vpack.c.bf16 %v165, %v164
    %v182 = vpack.c.bf16 %v167, %v166
    %v183 = vpack.c.bf16 %v169, %v168
    %v184 = vpack.c.bf16 %v171, %v170
    %v185 = vpack.c.bf16 %v173, %v172
    %v186 = vpack.c.bf16 %v175, %v174
    %v187 = vpack.c.bf16 %v177, %v176
    %v188 = vpack.c.bf16 %v179, %v178
    %v189 = vld [vmem:[%s2] sm:$0x1]
    %198 = vrot.lane.b32.xlu0 %v181, 32
    %v199 = vpop.permute.xlu0 %198
    %200 = vrot.lane.b32.xlu0 %v182, 32
    %v201 = vpop.permute.xlu0 %200
    %202 = vrot.lane.b32.xlu0 %v183, 32
    %v203 = vpop.permute.xlu0 %202
    %204 = vrot.lane.b32.xlu0 %v184, 32
    %v205 = vpop.permute.xlu0 %204
    %206 = vrot.lane.b32.xlu0 %v185, 32
    %v207 = vpop.permute.xlu0 %206
    %208 = vrot.lane.b32.xlu0 %v186, 32
    %v209 = vpop.permute.xlu0 %208
    %210 = vrot.lane.b32.xlu0 %v187, 32
    %v211 = vpop.permute.xlu0 %210
    %212 = vrot.lane.b32.xlu0 %v188, 32
    %v213 = vpop.permute.xlu0 %212
    %v215 = vsel %vm90, %v180, 0
    %v218 = vsel %vm90, %v199, 0
    %v221 = vsel %vm90, %v201, 0
    %v224 = vsel %vm90, %v203, 0
    %v227 = vsel %vm90, %v205, 0
    %v230 = vsel %vm90, %v207, 0
    %v233 = vsel %vm90, %v209, 0
    %v236 = vsel %vm90, %v211, 0
    %v239 = vsel %vm90, %v213, 0
    %241 = vmatpush.bf16.xpose.msra.mxu0 %v239
    %242 = vmatpush.bf16.xpose.msra.mxu0 %v236
    %243 = vmatpush.bf16.xpose.msra.mxu0 %v233
    %244 = vmatpush.bf16.xpose.msra.mxu0 %v230
    %245 = vmatpush.bf16.xpose.msra.mxu0 %v227
    %246 = vmatpush.bf16.xpose.msra.mxu0 %v224
    %247 = vmatpush.bf16.xpose.msra.mxu0 %v221
    %248 = vmatpush.bf16.xpose.msra.mxu0 %v218
    %249 = vmatmul.bf16.gmra.mxu0 %v215
    %v250 = vpop.f32.mrf.mxu0
    %v251 = vadd.f32 %v189, %v250
    %v252 = vpop.f32.mrf.mxu0
    %253 = vdwg.mxu0
    %v254 = vxor.u32 %v251, 2147483648
    %v255 = vmul.f32 %v254, 1.442695
    %v256 = vpow.pop %v255
    %v257 = vadd.f32 %v256, 1.0
    %v258 = vrcp.pop %v257
    %v259 = vmul.f32 %v257, %v258
    %v260 = vsub.f32 1.0, %v259
    %v261 = vmul.f32 %v258, %v260
    %v262 = vadd.f32 %v258, %v261
    %vm263 = vweird.f32 %v257
    %vm264 = vweird.f32 %v258
    %vm265 = vmor %vm263, %vm264
    %v266 = vsel %vm265, %v258, %v262
    %v267 = vand.u32 2147483647, %v257
    %vm268 = vcmp.eq.f32.partialorder %v267, 8.507059e+37
    %v269 = vand.u32 %v257, 2147483648
    %v270 = vor.u32 1.1754944e-38, %v269
    %v271 = vsel %vm268, %v270, %v266
    %v272 = vmul.f32 1.0, %v271
    %v273 = vpack.c.bf16 %v127, %v125
    %v274 = vpack.c.bf16 %v132, %v130
    %v275 = vpack.c.bf16 %v137, %v135
    %v276 = vpack.c.bf16 %v142, %v140
    %v277 = vpack.c.bf16 %v147, %v145
    %v278 = vpack.c.bf16 %v152, %v150
    %v279 = vpack.c.bf16 %v157, %v155
    %v280 = vpack.c.bf16 %v162, %v160
    %289 = vrot.lane.b32.xlu0 %v273, 96
    %v290 = vpop.permute.xlu0 %289
    %291 = vrot.lane.b32.xlu0 %v274, 96
    %v292 = vpop.permute.xlu0 %291
    %293 = vrot.lane.b32.xlu0 %v275, 96
    %v294 = vpop.permute.xlu0 %293
    %295 = vrot.lane.b32.xlu0 %v276, 96
    %v296 = vpop.permute.xlu0 %295
    %297 = vrot.lane.b32.xlu0 %v277, 96
    %v298 = vpop.permute.xlu0 %297
    %299 = vrot.lane.b32.xlu0 %v278, 96
    %v300 = vpop.permute.xlu0 %299
    %301 = vrot.lane.b32.xlu0 %v279, 96
    %v302 = vpop.permute.xlu0 %301
    %303 = vrot.lane.b32.xlu0 %v280, 96
    %v304 = vpop.permute.xlu0 %303
    %v306 = vsel %vm90, %v273, 0
    %v309 = vsel %vm90, %v274, 0
    %v312 = vsel %vm90, %v275, 0
    %v315 = vsel %vm90, %v276, 0
    %v318 = vsel %vm90, %v277, 0
    %v321 = vsel %vm90, %v278, 0
    %v324 = vsel %vm90, %v279, 0
    %v327 = vsel %vm90, %v280, 0
    %v330 = vsel %vm90, %v290, 0
    %v333 = vsel %vm90, %v292, 0
    %v336 = vsel %vm90, %v294, 0
    %v339 = vsel %vm90, %v296, 0
    %v342 = vsel %vm90, %v298, 0
    %v345 = vsel %vm90, %v300, 0
    %v348 = vsel %vm90, %v302, 0
    %v351 = vsel %vm90, %v304, 0
    %353 = vmatpush.bf16.xpose.msra.mxu0 %v351
    %354 = vmatpush.bf16.xpose.msra.mxu0 %v348
    %355 = vmatpush.bf16.xpose.msra.mxu0 %v345
    %356 = vmatpush.bf16.xpose.msra.mxu0 %v342
    %357 = vmatpush.bf16.xpose.msra.mxu0 %v339
    %358 = vmatpush.bf16.xpose.msra.mxu0 %v336
    %359 = vmatpush.bf16.xpose.msra.mxu0 %v333
    %360 = vmatpush.bf16.xpose.msra.mxu0 %v330
    %361 = vmatmul.bf16.gmra.mxu0 %v306
    %v362 = vpop.f32.mrf.mxu0
    %v363 = vadd.f32 0.0, %v362
    %v364 = vpop.f32.mrf.mxu0
    %v365 = vadd.f32 0.0, %v364
    %366 = vmatmul.bf16.gmra.mxu0 %v309
    %v367 = vpop.f32.mrf.mxu0
    %v368 = vadd.f32 0.0, %v367
    %v369 = vpop.f32.mrf.mxu0
    %v370 = vadd.f32 0.0, %v369
    %371 = vmatmul.bf16.gmra.mxu0 %v312
    %v372 = vpop.f32.mrf.mxu0
    %v373 = vadd.f32 0.0, %v372
    %v374 = vpop.f32.mrf.mxu0
    %v375 = vadd.f32 0.0, %v374
    %376 = vmatmul.bf16.gmra.mxu0 %v315
    %v377 = vpop.f32.mrf.mxu0
    %v378 = vadd.f32 0.0, %v377
    %v379 = vpop.f32.mrf.mxu0
    %v380 = vadd.f32 0.0, %v379
    %381 = vmatmul.bf16.gmra.mxu0 %v318
    %v382 = vpop.f32.mrf.mxu0
    %v383 = vadd.f32 0.0, %v382
    %v384 = vpop.f32.mrf.mxu0
    %v385 = vadd.f32 0.0, %v384
    %386 = vmatmul.bf16.gmra.mxu0 %v321
    %v387 = vpop.f32.mrf.mxu0
    %v388 = vadd.f32 0.0, %v387
    %v389 = vpop.f32.mrf.mxu0
    %v390 = vadd.f32 0.0, %v389
    %391 = vmatmul.bf16.gmra.mxu0 %v324
    %v392 = vpop.f32.mrf.mxu0
    %v393 = vadd.f32 0.0, %v392
    %v394 = vpop.f32.mrf.mxu0
    %v395 = vadd.f32 0.0, %v394
    %396 = vmatmul.bf16.gmra.mxu0 %v327
    %v397 = vpop.f32.mrf.mxu0
    %v398 = vadd.f32 0.0, %v397
    %v399 = vpop.f32.mrf.mxu0
    %v400 = vadd.f32 0.0, %v399
    %401 = vdwg.mxu0
    %v402 = vmul.f32 %v272, 0.17677669
    %v403 = vperm.slane %v402, 0
    %v404 = vmul.f32 %v363, %v403
    %v405 = vmul.f32 %v365, %v403
    %v406 = vmul.f32 %v368, %v403
    %v407 = vmul.f32 %v370, %v403
    %v408 = vmul.f32 %v373, %v403
    %v409 = vmul.f32 %v375, %v403
    %v410 = vmul.f32 %v378, %v403
    %v411 = vmul.f32 %v380, %v403
    %v412 = vmul.f32 %v383, %v403
    %v413 = vmul.f32 %v385, %v403
    %v414 = vmul.f32 %v388, %v403
    %v415 = vmul.f32 %v390, %v403
    %v416 = vmul.f32 %v393, %v403
    %v417 = vmul.f32 %v395, %v403
    %v418 = vmul.f32 %v398, %v403
    %v419 = vmul.f32 %v400, %v403
    %v420 = vld [vmem:[%s1] sm:$0x1]
    %vm421 = vcmp.lt.f32.partialorder %v420, 0.5
    %v422 = vsel %vm421, 1, 0
    %v423 = vperm.slane %v422, 0
    %vm424 = vcmp.eq.s32.totalorder %v423, 1
    %v425 = vsel %vm424, -1e+09, %v404
    %v426 = vsel %vm424, -1e+09, %v405
    %v427 = vsel %vm424, -1e+09, %v406
    %v428 = vsel %vm424, -1e+09, %v407
    %v429 = vsel %vm424, -1e+09, %v408
    %v430 = vsel %vm424, -1e+09, %v409
    %v431 = vsel %vm424, -1e+09, %v410
    %v432 = vsel %vm424, -1e+09, %v411
    %v433 = vsel %vm424, -1e+09, %v412
    %v434 = vsel %vm424, -1e+09, %v413
    %v435 = vsel %vm424, -1e+09, %v414
    %v436 = vsel %vm424, -1e+09, %v415
    %v437 = vsel %vm424, -1e+09, %v416
    %v438 = vsel %vm424, -1e+09, %v417
    %v439 = vsel %vm424, -1e+09, %v418
    %v440 = vsel %vm424, -1e+09, %v419
    %v441 = vld [vmem:[%s6] sm:$0xff]
    %v442 = vld [vmem:[%s6 + $0x8] sm:$0xff]
    %v443 = vld [vmem:[%s6 + $0x10] sm:$0xff]
    %v444 = vld [vmem:[%s6 + $0x18] sm:$0xff]
    %v445 = vld [vmem:[%s6 + $0x20] sm:$0xff]
    %v446 = vld [vmem:[%s6 + $0x28] sm:$0xff]
    %v447 = vld [vmem:[%s6 + $0x30] sm:$0xff]
    %v448 = vld [vmem:[%s6 + $0x38] sm:$0xff]
    %v449 = vld [vmem:[%s6 + $0x40] sm:$0xff]
    %v450 = vld [vmem:[%s6 + $0x48] sm:$0xff]
    %v451 = vld [vmem:[%s6 + $0x50] sm:$0xff]
    %v452 = vld [vmem:[%s6 + $0x58] sm:$0xff]
    %v453 = vld [vmem:[%s6 + $0x60] sm:$0xff]
    %v454 = vld [vmem:[%s6 + $0x68] sm:$0xff]
    %v455 = vld [vmem:[%s6 + $0x70] sm:$0xff]
    %v456 = vld [vmem:[%s6 + $0x78] sm:$0xff]
    %v457 = vadd.f32 %v425, %v441
    %v458 = vadd.f32 %v426, %v442
    %v459 = vadd.f32 %v427, %v443
    %v460 = vadd.f32 %v428, %v444
    %v461 = vadd.f32 %v429, %v445
    %v462 = vadd.f32 %v430, %v446
    %v463 = vadd.f32 %v431, %v447
    %v464 = vadd.f32 %v432, %v448
    %v465 = vadd.f32 %v433, %v449
    %v466 = vadd.f32 %v434, %v450
    %v467 = vadd.f32 %v435, %v451
    %v468 = vadd.f32 %v436, %v452
    %v469 = vadd.f32 %v437, %v453
    %v470 = vadd.f32 %v438, %v454
    %v471 = vadd.f32 %v439, %v455
    %v472 = vadd.f32 %v440, %v456
    %473 = vmax.xlane.f32.xlu0 %v457
    %v474 = vpop.xlane.xlu0 %473
    %475 = vmax.xlane.f32.xlu0 %v458
    %v476 = vpop.xlane.xlu0 %475
    %477 = vmax.xlane.f32.xlu0 %v459
    %v478 = vpop.xlane.xlu0 %477
    %479 = vmax.xlane.f32.xlu0 %v460
    %v480 = vpop.xlane.xlu0 %479
    %481 = vmax.xlane.f32.xlu0 %v461
    %v482 = vpop.xlane.xlu0 %481
    %483 = vmax.xlane.f32.xlu0 %v462
    %v484 = vpop.xlane.xlu0 %483
    %485 = vmax.xlane.f32.xlu0 %v463
    %v486 = vpop.xlane.xlu0 %485
    %487 = vmax.xlane.f32.xlu0 %v464
    %v488 = vpop.xlane.xlu0 %487
    %489 = vmax.xlane.f32.xlu0 %v465
    %v490 = vpop.xlane.xlu0 %489
    %491 = vmax.xlane.f32.xlu0 %v466
    %v492 = vpop.xlane.xlu0 %491
    %493 = vmax.xlane.f32.xlu0 %v467
    %v494 = vpop.xlane.xlu0 %493
    %495 = vmax.xlane.f32.xlu0 %v468
    %v496 = vpop.xlane.xlu0 %495
    %497 = vmax.xlane.f32.xlu0 %v469
    %v498 = vpop.xlane.xlu0 %497
    %499 = vmax.xlane.f32.xlu0 %v470
    %v500 = vpop.xlane.xlu0 %499
    %501 = vmax.xlane.f32.xlu0 %v471
    %v502 = vpop.xlane.xlu0 %501
    %503 = vmax.xlane.f32.xlu0 %v472
    %v504 = vpop.xlane.xlu0 %503
    %v505 = vsub.f32 %v457, %v474
    %v506 = vsub.f32 %v458, %v476
    %v507 = vsub.f32 %v459, %v478
    %v508 = vsub.f32 %v460, %v480
    %v509 = vsub.f32 %v461, %v482
    %v510 = vsub.f32 %v462, %v484
    %v511 = vsub.f32 %v463, %v486
    %v512 = vsub.f32 %v464, %v488
    %v513 = vsub.f32 %v465, %v490
    %v514 = vsub.f32 %v466, %v492
    %v515 = vsub.f32 %v467, %v494
    %v516 = vsub.f32 %v468, %v496
    %v517 = vsub.f32 %v469, %v498
    %v518 = vsub.f32 %v470, %v500
    %v519 = vsub.f32 %v471, %v502
    %v520 = vsub.f32 %v472, %v504
    %v521 = vmul.f32 %v505, 1.442695
    %v522 = vpow.pop %v521
    %v523 = vmul.f32 %v506, 1.442695
    %v524 = vpow.pop %v523
    %v525 = vmul.f32 %v507, 1.442695
    %v526 = vpow.pop %v525
    %v527 = vmul.f32 %v508, 1.442695
    %v528 = vpow.pop %v527
    %v529 = vmul.f32 %v509, 1.442695
    %v530 = vpow.pop %v529
    %v531 = vmul.f32 %v510, 1.442695
    %v532 = vpow.pop %v531
    %v533 = vmul.f32 %v511, 1.442695
    %v534 = vpow.pop %v533
    %v535 = vmul.f32 %v512, 1.442695
    %v536 = vpow.pop %v535
    %v537 = vmul.f32 %v513, 1.442695
    %v538 = vpow.pop %v537
    %v539 = vmul.f32 %v514, 1.442695
    %v540 = vpow.pop %v539
    %v541 = vmul.f32 %v515, 1.442695
    %v542 = vpow.pop %v541
    %v543 = vmul.f32 %v516, 1.442695
    %v544 = vpow.pop %v543
    %v545 = vmul.f32 %v517, 1.442695
    %v546 = vpow.pop %v545
    %v547 = vmul.f32 %v518, 1.442695
    %v548 = vpow.pop %v547
    %v549 = vmul.f32 %v519, 1.442695
    %v550 = vpow.pop %v549
    %v551 = vmul.f32 %v520, 1.442695
    %v552 = vpow.pop %v551
    %553 = vadd.xlane.f32.xlu0 %v522
    %v554 = vpop.xlane.xlu0 %553
    %555 = vadd.xlane.f32.xlu0 %v524
    %v556 = vpop.xlane.xlu0 %555
    %557 = vadd.xlane.f32.xlu0 %v526
    %v558 = vpop.xlane.xlu0 %557
    %559 = vadd.xlane.f32.xlu0 %v528
    %v560 = vpop.xlane.xlu0 %559
    %561 = vadd.xlane.f32.xlu0 %v530
    %v562 = vpop.xlane.xlu0 %561
    %563 = vadd.xlane.f32.xlu0 %v532
    %v564 = vpop.xlane.xlu0 %563
    %565 = vadd.xlane.f32.xlu0 %v534
    %v566 = vpop.xlane.xlu0 %565
    %567 = vadd.xlane.f32.xlu0 %v536
    %v568 = vpop.xlane.xlu0 %567
    %569 = vadd.xlane.f32.xlu0 %v538
    %v570 = vpop.xlane.xlu0 %569
    %571 = vadd.xlane.f32.xlu0 %v540
    %v572 = vpop.xlane.xlu0 %571
    %573 = vadd.xlane.f32.xlu0 %v542
    %v574 = vpop.xlane.xlu0 %573
    %575 = vadd.xlane.f32.xlu0 %v544
    %v576 = vpop.xlane.xlu0 %575
    %577 = vadd.xlane.f32.xlu0 %v546
    %v578 = vpop.xlane.xlu0 %577
    %579 = vadd.xlane.f32.xlu0 %v548
    %v580 = vpop.xlane.xlu0 %579
    %581 = vadd.xlane.f32.xlu0 %v550
    %v582 = vpop.xlane.xlu0 %581
    %583 = vadd.xlane.f32.xlu0 %v552
    %v584 = vpop.xlane.xlu0 %583
    %v585 = vrcp.pop %v554
    %v586 = vrcp.pop %v556
    %v587 = vrcp.pop %v558
    %v588 = vrcp.pop %v560
    %v589 = vrcp.pop %v562
    %v590 = vrcp.pop %v564
    %v591 = vrcp.pop %v566
    %v592 = vrcp.pop %v568
    %v593 = vrcp.pop %v570
    %v594 = vrcp.pop %v572
    %v595 = vrcp.pop %v574
    %v596 = vrcp.pop %v576
    %v597 = vrcp.pop %v578
    %v598 = vrcp.pop %v580
    %v599 = vrcp.pop %v582
    %v600 = vrcp.pop %v584
    %v601 = vmul.f32 %v522, %v585
    %v602 = vmul.f32 %v524, %v586
    %v603 = vmul.f32 %v526, %v587
    %v604 = vmul.f32 %v528, %v588
    %v605 = vmul.f32 %v530, %v589
    %v606 = vmul.f32 %v532, %v590
    %v607 = vmul.f32 %v534, %v591
    %v608 = vmul.f32 %v536, %v592
    %v609 = vmul.f32 %v538, %v593
    %v610 = vmul.f32 %v540, %v594
    %v611 = vmul.f32 %v542, %v595
    %v612 = vmul.f32 %v544, %v596
    %v613 = vmul.f32 %v546, %v597
    %v614 = vmul.f32 %v548, %v598
    %v615 = vmul.f32 %v550, %v599
    %v616 = vmul.f32 %v552, %v600
    %v617 = vld [vmem:[#allocation2] sm:$0xff]
    %v618 = vld [vmem:[#allocation2 + $0x8] sm:$0xff]
    %v619 = vld [vmem:[#allocation2 + $0x10] sm:$0xff]
    %v620 = vld [vmem:[#allocation2 + $0x18] sm:$0xff]
    %v621 = vld [vmem:[#allocation2 + $0x20] sm:$0xff]
    %v622 = vld [vmem:[#allocation2 + $0x28] sm:$0xff]
    %v623 = vld [vmem:[#allocation2 + $0x30] sm:$0xff]
    %v624 = vld [vmem:[#allocation2 + $0x38] sm:$0xff]
    %v625 = vld [vmem:[#allocation2 + $0x40] sm:$0xff]
    %v626 = vld [vmem:[#allocation2 + $0x48] sm:$0xff]
    %v627 = vld [vmem:[#allocation2 + $0x50] sm:$0xff]
    %v628 = vld [vmem:[#allocation2 + $0x58] sm:$0xff]
    %v629 = vld [vmem:[#allocation2 + $0x60] sm:$0xff]
    %v630 = vld [vmem:[#allocation2 + $0x68] sm:$0xff]
    %v631 = vld [vmem:[#allocation2 + $0x70] sm:$0xff]
    %v632 = vld [vmem:[#allocation2 + $0x78] sm:$0xff]
    %v633 = vadd.f32 %v425, %v617
    %v634 = vadd.f32 %v426, %v618
    %v635 = vadd.f32 %v427, %v619
    %v636 = vadd.f32 %v428, %v620
    %v637 = vadd.f32 %v429, %v621
    %v638 = vadd.f32 %v430, %v622
    %v639 = vadd.f32 %v431, %v623
    %v640 = vadd.f32 %v432, %v624
    %v641 = vadd.f32 %v433, %v625
    %v642 = vadd.f32 %v434, %v626
    %v643 = vadd.f32 %v435, %v627
    %v644 = vadd.f32 %v436, %v628
    %v645 = vadd.f32 %v437, %v629
    %v646 = vadd.f32 %v438, %v630
    %v647 = vadd.f32 %v439, %v631
    %v648 = vadd.f32 %v440, %v632
    %649 = vmax.xlane.f32.xlu0 %v633
    %v650 = vpop.xlane.xlu0 %649
    %651 = vmax.xlane.f32.xlu0 %v634
    %v652 = vpop.xlane.xlu0 %651
    %653 = vmax.xlane.f32.xlu0 %v635
    %v654 = vpop.xlane.xlu0 %653
    %655 = vmax.xlane.f32.xlu0 %v636
    %v656 = vpop.xlane.xlu0 %655
    %657 = vmax.xlane.f32.xlu0 %v637
    %v658 = vpop.xlane.xlu0 %657
    %659 = vmax.xlane.f32.xlu0 %v638
    %v660 = vpop.xlane.xlu0 %659
    %661 = vmax.xlane.f32.xlu0 %v639
    %v662 = vpop.xlane.xlu0 %661
    %663 = vmax.xlane.f32.xlu0 %v640
    %v664 = vpop.xlane.xlu0 %663
    %665 = vmax.xlane.f32.xlu0 %v641
    %v666 = vpop.xlane.xlu0 %665
    %667 = vmax.xlane.f32.xlu0 %v642
    %v668 = vpop.xlane.xlu0 %667
    %669 = vmax.xlane.f32.xlu0 %v643
    %v670 = vpop.xlane.xlu0 %669
    %671 = vmax.xlane.f32.xlu0 %v644
    %v672 = vpop.xlane.xlu0 %671
    %673 = vmax.xlane.f32.xlu0 %v645
    %v674 = vpop.xlane.xlu0 %673
    %675 = vmax.xlane.f32.xlu0 %v646
    %v676 = vpop.xlane.xlu0 %675
    %677 = vmax.xlane.f32.xlu0 %v647
    %v678 = vpop.xlane.xlu0 %677
    %679 = vmax.xlane.f32.xlu0 %v648
    %v680 = vpop.xlane.xlu0 %679
    %v681 = vsub.f32 %v633, %v650
    %v682 = vsub.f32 %v634, %v652
    %v683 = vsub.f32 %v635, %v654
    %v684 = vsub.f32 %v636, %v656
    %v685 = vsub.f32 %v637, %v658
    %v686 = vsub.f32 %v638, %v660
    %v687 = vsub.f32 %v639, %v662
    %v688 = vsub.f32 %v640, %v664
    %v689 = vsub.f32 %v641, %v666
    %v690 = vsub.f32 %v642, %v668
    %v691 = vsub.f32 %v643, %v670
    %v692 = vsub.f32 %v644, %v672
    %v693 = vsub.f32 %v645, %v674
    %v694 = vsub.f32 %v646, %v676
    %v695 = vsub.f32 %v647, %v678
    %v696 = vsub.f32 %v648, %v680
    %v697 = vmul.f32 %v681, 1.442695
    %v698 = vpow.pop %v697
    %v699 = vmul.f32 %v682, 1.442695
    %v700 = vpow.pop %v699
    %v701 = vmul.f32 %v683, 1.442695
    %v702 = vpow.pop %v701
    %v703 = vmul.f32 %v684, 1.442695
    %v704 = vpow.pop %v703
    %v705 = vmul.f32 %v685, 1.442695
    %v706 = vpow.pop %v705
    %v707 = vmul.f32 %v686, 1.442695
    %v708 = vpow.pop %v707
    %v709 = vmul.f32 %v687, 1.442695
    %v710 = vpow.pop %v709
    %v711 = vmul.f32 %v688, 1.442695
    %v712 = vpow.pop %v711
    %v713 = vmul.f32 %v689, 1.442695
    %v714 = vpow.pop %v713
    %v715 = vmul.f32 %v690, 1.442695
    %v716 = vpow.pop %v715
    %v717 = vmul.f32 %v691, 1.442695
    %v718 = vpow.pop %v717
    %v719 = vmul.f32 %v692, 1.442695
    %v720 = vpow.pop %v719
    %v721 = vmul.f32 %v693, 1.442695
    %v722 = vpow.pop %v721
    %v723 = vmul.f32 %v694, 1.442695
    %v724 = vpow.pop %v723
    %v725 = vmul.f32 %v695, 1.442695
    %v726 = vpow.pop %v725
    %v727 = vmul.f32 %v696, 1.442695
    %v728 = vpow.pop %v727
    %729 = vadd.xlane.f32.xlu0 %v698
    %v730 = vpop.xlane.xlu0 %729
    %731 = vadd.xlane.f32.xlu0 %v700
    %v732 = vpop.xlane.xlu0 %731
    %733 = vadd.xlane.f32.xlu0 %v702
    %v734 = vpop.xlane.xlu0 %733
    %735 = vadd.xlane.f32.xlu0 %v704
    %v736 = vpop.xlane.xlu0 %735
    %737 = vadd.xlane.f32.xlu0 %v706
    %v738 = vpop.xlane.xlu0 %737
    %739 = vadd.xlane.f32.xlu0 %v708
    %v740 = vpop.xlane.xlu0 %739
    %741 = vadd.xlane.f32.xlu0 %v710
    %v742 = vpop.xlane.xlu0 %741
    %743 = vadd.xlane.f32.xlu0 %v712
    %v744 = vpop.xlane.xlu0 %743
    %745 = vadd.xlane.f32.xlu0 %v714
    %v746 = vpop.xlane.xlu0 %745
    %747 = vadd.xlane.f32.xlu0 %v716
    %v748 = vpop.xlane.xlu0 %747
    %749 = vadd.xlane.f32.xlu0 %v718
    %v750 = vpop.xlane.xlu0 %749
    %751 = vadd.xlane.f32.xlu0 %v720
    %v752 = vpop.xlane.xlu0 %751
    %753 = vadd.xlane.f32.xlu0 %v722
    %v754 = vpop.xlane.xlu0 %753
    %755 = vadd.xlane.f32.xlu0 %v724
    %v756 = vpop.xlane.xlu0 %755
    %757 = vadd.xlane.f32.xlu0 %v726
    %v758 = vpop.xlane.xlu0 %757
    %759 = vadd.xlane.f32.xlu0 %v728
    %v760 = vpop.xlane.xlu0 %759
    %v761 = vrcp.pop %v730
    %v762 = vrcp.pop %v732
    %v763 = vrcp.pop %v734
    %v764 = vrcp.pop %v736
    %v765 = vrcp.pop %v738
    %v766 = vrcp.pop %v740
    %v767 = vrcp.pop %v742
    %v768 = vrcp.pop %v744
    %v769 = vrcp.pop %v746
    %v770 = vrcp.pop %v748
    %v771 = vrcp.pop %v750
    %v772 = vrcp.pop %v752
    %v773 = vrcp.pop %v754
    %v774 = vrcp.pop %v756
    %v775 = vrcp.pop %v758
    %v776 = vrcp.pop %v760
    %v777 = vmul.f32 %v698, %v761
    %v778 = vmul.f32 %v700, %v762
    %v779 = vmul.f32 %v702, %v763
    %v780 = vmul.f32 %v704, %v764
    %v781 = vmul.f32 %v706, %v765
    %v782 = vmul.f32 %v708, %v766
    %v783 = vmul.f32 %v710, %v767
    %v784 = vmul.f32 %v712, %v768
    %v785 = vmul.f32 %v714, %v769
    %v786 = vmul.f32 %v716, %v770
    %v787 = vmul.f32 %v718, %v771
    %v788 = vmul.f32 %v720, %v772
    %v789 = vmul.f32 %v722, %v773
    %v790 = vmul.f32 %v724, %v774
    %v791 = vmul.f32 %v726, %v775
    %v792 = vmul.f32 %v728, %v776
    %v793 = vadd.f32 %v601, %v777
    %v794 = vadd.f32 %v602, %v778
    %v795 = vadd.f32 %v603, %v779
    %v796 = vadd.f32 %v604, %v780
    %v797 = vadd.f32 %v605, %v781
    %v798 = vadd.f32 %v606, %v782
    %v799 = vadd.f32 %v607, %v783
    %v800 = vadd.f32 %v608, %v784
    %v801 = vadd.f32 %v609, %v785
    %v802 = vadd.f32 %v610, %v786
    %v803 = vadd.f32 %v611, %v787
    %v804 = vadd.f32 %v612, %v788
    %v805 = vadd.f32 %v613, %v789
    %v806 = vadd.f32 %v614, %v790
    %v807 = vadd.f32 %v615, %v791
    %v808 = vadd.f32 %v616, %v792
    %825 = vrot.lane.b32.xlu0 %v125, 64
    %v826 = vpop.permute.xlu0 %825
    %827 = vrot.lane.b32.xlu0 %v127, 64
    %v828 = vpop.permute.xlu0 %827
    %829 = vrot.lane.b32.xlu0 %v130, 64
    %v830 = vpop.permute.xlu0 %829
    %831 = vrot.lane.b32.xlu0 %v132, 64
    %v832 = vpop.permute.xlu0 %831
    %833 = vrot.lane.b32.xlu0 %v135, 64
    %v834 = vpop.permute.xlu0 %833
    %835 = vrot.lane.b32.xlu0 %v137, 64
    %v836 = vpop.permute.xlu0 %835
    %837 = vrot.lane.b32.xlu0 %v140, 64
    %v838 = vpop.permute.xlu0 %837
    %839 = vrot.lane.b32.xlu0 %v142, 64
    %v840 = vpop.permute.xlu0 %839
    %841 = vrot.lane.b32.xlu0 %v145, 64
    %v842 = vpop.permute.xlu0 %841
    %843 = vrot.lane.b32.xlu0 %v147, 64
    %v844 = vpop.permute.xlu0 %843
    %845 = vrot.lane.b32.xlu0 %v150, 64
    %v846 = vpop.permute.xlu0 %845
    %847 = vrot.lane.b32.xlu0 %v152, 64
    %v848 = vpop.permute.xlu0 %847
    %849 = vrot.lane.b32.xlu0 %v155, 64
    %v850 = vpop.permute.xlu0 %849
    %851 = vrot.lane.b32.xlu0 %v157, 64
    %v852 = vpop.permute.xlu0 %851
    %853 = vrot.lane.b32.xlu0 %v160, 64
    %v854 = vpop.permute.xlu0 %853
    %855 = vrot.lane.b32.xlu0 %v162, 64
    %v856 = vpop.permute.xlu0 %855
    %873 = vmatpush.msra.mxu0 %v856
    %874 = vmatpush.msra.mxu0 %v854
    %875 = vmatpush.msra.mxu0 %v852
    %876 = vmatpush.msra.mxu0 %v850
    %877 = vmatpush.msra.mxu0 %v848
    %878 = vmatpush.msra.mxu0 %v846
    %879 = vmatpush.msra.mxu0 %v844
    %880 = vmatpush.msra.mxu0 %v842
    %881 = vmatpush.msra.mxu0 %v840
    %882 = vmatpush.msra.mxu0 %v838
    %883 = vmatpush.msra.mxu0 %v836
    %884 = vmatpush.msra.mxu0 %v834
    %885 = vmatpush.msra.mxu0 %v832
    %886 = vmatpush.msra.mxu0 %v830
    %887 = vmatpush.msra.mxu0 %v828
    %888 = vmatpush.msra.mxu0 %v826
    %889 = vmatmul.f32.gmra.mxu0 %v793
    %v890 = vpop.f32.mrf.mxu0
    %v891 = vadd.f32 0.0, %v890
    %892 = vmatmul.f32.gmra.mxu0 %v794
    %v893 = vpop.f32.mrf.mxu0
    %v894 = vadd.f32 0.0, %v893
    %895 = vmatmul.f32.gmra.mxu0 %v795
    %v896 = vpop.f32.mrf.mxu0
    %v897 = vadd.f32 0.0, %v896
    %898 = vmatmul.f32.gmra.mxu0 %v796
    %v899 = vpop.f32.mrf.mxu0
    %v900 = vadd.f32 0.0, %v899
    %901 = vmatmul.f32.gmra.mxu0 %v797
    %v902 = vpop.f32.mrf.mxu0
    %v903 = vadd.f32 0.0, %v902
    %904 = vmatmul.f32.gmra.mxu0 %v798
    %v905 = vpop.f32.mrf.mxu0
    %v906 = vadd.f32 0.0, %v905
    %907 = vmatmul.f32.gmra.mxu0 %v799
    %v908 = vpop.f32.mrf.mxu0
    %v909 = vadd.f32 0.0, %v908
    %910 = vmatmul.f32.gmra.mxu0 %v800
    %v911 = vpop.f32.mrf.mxu0
    %v912 = vadd.f32 0.0, %v911
    %913 = vmatmul.f32.gmra.mxu0 %v801
    %v914 = vpop.f32.mrf.mxu0
    %v915 = vadd.f32 0.0, %v914
    %916 = vmatmul.f32.gmra.mxu0 %v802
    %v917 = vpop.f32.mrf.mxu0
    %v918 = vadd.f32 0.0, %v917
    %919 = vmatmul.f32.gmra.mxu0 %v803
    %v920 = vpop.f32.mrf.mxu0
    %v921 = vadd.f32 0.0, %v920
    %922 = vmatmul.f32.gmra.mxu0 %v804
    %v923 = vpop.f32.mrf.mxu0
    %v924 = vadd.f32 0.0, %v923
    %925 = vmatmul.f32.gmra.mxu0 %v805
    %v926 = vpop.f32.mrf.mxu0
    %v927 = vadd.f32 0.0, %v926
    %928 = vmatmul.f32.gmra.mxu0 %v806
    %v929 = vpop.f32.mrf.mxu0
    %v930 = vadd.f32 0.0, %v929
    %931 = vmatmul.f32.gmra.mxu0 %v807
    %v932 = vpop.f32.mrf.mxu0
    %v933 = vadd.f32 0.0, %v932
    %934 = vmatmul.f32.gmra.mxu0 %v808
    %v935 = vpop.f32.mrf.mxu0
    %v936 = vadd.f32 0.0, %v935
    %937 = vdwg.mxu0
    %938 = vst.msk [vmem:[%s8] sm:$0xff] %vm90, %v891
    %939 = vst.msk [vmem:[%s8 + $0x8] sm:$0xff] %vm90, %v894
    %940 = vst.msk [vmem:[%s8 + $0x10] sm:$0xff] %vm90, %v897
    %941 = vst.msk [vmem:[%s8 + $0x18] sm:$0xff] %vm90, %v900
    %942 = vst.msk [vmem:[%s8 + $0x20] sm:$0xff] %vm90, %v903
    %943 = vst.msk [vmem:[%s8 + $0x28] sm:$0xff] %vm90, %v906
    %944 = vst.msk [vmem:[%s8 + $0x30] sm:$0xff] %vm90, %v909
    %945 = vst.msk [vmem:[%s8 + $0x38] sm:$0xff] %vm90, %v912
    %946 = vst.msk [vmem:[%s8 + $0x40] sm:$0xff] %vm90, %v915
    %947 = vst.msk [vmem:[%s8 + $0x48] sm:$0xff] %vm90, %v918
    %948 = vst.msk [vmem:[%s8 + $0x50] sm:$0xff] %vm90, %v921
    %949 = vst.msk [vmem:[%s8 + $0x58] sm:$0xff] %vm90, %v924
    %950 = vst.msk [vmem:[%s8 + $0x60] sm:$0xff] %vm90, %v927
    %951 = vst.msk [vmem:[%s8 + $0x68] sm:$0xff] %vm90, %v930
    %952 = vst.msk [vmem:[%s8 + $0x70] sm:$0xff] %vm90, %v933
    %953 = vst.msk [vmem:[%s8 + $0x78] sm:$0xff] %vm90, %v936
    // Predicated region
    $region38: #{tpu_custom_call.1} parent=1 // pred_check
      _
    $region39: #{tpu_custom_call.1} parent=1 // pred_check_branch
      %955 = sbr.rel (0) target = $region41
    $region40: #{tpu_custom_call.1} parent=1 // pred_region
      _
    $region41: #{tpu_custom_call.1} parent=1 // pred_fallthru
      _
    // Predicated region
    $region42: #{tpu_custom_call.1} parent=1 // pred_check
      _
    $region43: #{tpu_custom_call.1} parent=1 // pred_check_branch
      %957 = sbr.rel (0) target = $region45
    $region44: #{tpu_custom_call.1} parent=1 // pred_region
      _
    $region45: #{tpu_custom_call.1} parent=1 // pred_fallthru
      _
    %958 = vsyncpa [#allocation3], 1

</llo_original>
